<compile_context>
chip_gen: v5e
topology: v5e:2x2
jax: 0.10.0
libtpu: 0.0.40
codegen_flags: <defaults>
</compile_context>

<pallas_src>
import functools

import jax
import jax.numpy as jnp
from jax.experimental import pallas as pl
from jax.experimental.pallas import tpu as pltpu


def _pow_gamma(v, gamma):
    """v ** gamma, using cheap VPU multiplies for small integer gamma."""
    if gamma == 0.0:
        return jnp.ones_like(v)
    if gamma == 1.0:
        return v
    if float(gamma).is_integer() and 1.0 < gamma <= 8.0:
        n = int(gamma)
        out = v
        for _ in range(n - 1):
            out = out * v
        return out
    return v ** jnp.float32(gamma)   # general pow -> exp/log on the EUP


def _loss_kernel(x_ref, t_ref, out_ref, acc_bf, acc_int, acc_uni, *,
                 alpha, gamma, bce_weight, focal_weight):
    j = pl.program_id(1)

    @pl.when(j == 0)
    def _():
        acc_bf[...] = jnp.zeros_like(acc_bf)
        acc_int[...] = jnp.zeros_like(acc_int)
        acc_uni[...] = jnp.zeros_like(acc_uni)

    x = x_ref[...].astype(jnp.float32)
    t = t_ref[...].astype(jnp.float32)

    # Fused log-sigmoid math: one exp + one log1p + one reciprocal per element.
    e = jnp.exp(-jnp.abs(x))                       # exp(-|x|)
    sp = jnp.log1p(e)                              # softplus(-|x|)
    relu_x = jnp.maximum(x, 0.0)
    relu_nx = jnp.maximum(-x, 0.0)
    p = jnp.where(x >= 0.0, 1.0, e) / (1.0 + e)    # sigmoid(x) (exact recip)
    log_p = -(relu_nx + sp)                        # log(sigmoid(x)); reference adds
    log_1mp = -(relu_x + sp)                       # 1e-7 inside the log -> diff << 1e-5

    # BCE-with-logits (numerically stable) and focal with gamma specialised
    # to plain multiplies for integer gamma (gamma==2 -> q*q, p*p).
    bce_elem = relu_x - x * t + sp
    pow_q = _pow_gamma(1.0 - p, gamma)
    pow_p = _pow_gamma(p, gamma)
    focal_elem = (-alpha * pow_q * t * log_p
                  - (1.0 - alpha) * pow_p * (1.0 - t) * log_1mp)

    # Elementwise (VALU-only) accumulation across the hw grid axis.
    acc_bf[...] += bce_weight * bce_elem + focal_weight * focal_elem
    acc_int[...] += p * t
    acc_uni[...] += p + t

    @pl.when(j == pl.num_programs(1) - 1)
    def _():
        eps = jnp.float32(1e-7)
        inter = jnp.sum(acc_int[...], axis=1, keepdims=True)    # (rows, 1)
        union = jnp.sum(acc_uni[...], axis=1, keepdims=True)
        dice_rows = 1.0 - (2.0 * inter + eps) / (union + eps)
        bf_sum = jnp.sum(acc_bf[...], keepdims=True)             # (1, 1)
        dice_sum = jnp.sum(dice_rows, keepdims=True)             # (1, 1)
        lane = jax.lax.broadcasted_iota(jnp.int32, (1, 128), 1)
        out_ref[...] = jnp.where(lane == 0, bf_sum,
                                 jnp.where(lane == 1, dice_sum, 0.0))


def _tile_candidates(dim, unit, target):
    """Divisor tile sizes of `dim` that are multiples of `unit` (<= target),
    descending.  Falls back to the full dimension (always a legal block)."""
    cands = [d for d in range(unit, min(dim, target) + 1, unit) if dim % d == 0]
    return sorted(cands, reverse=True) if cands else [dim]


def dice_focal_bce_loss(logits, targets, *, alpha=0.8, gamma=2.0,
                        bce_weight=1.0, dice_weight=1.0, focal_weight=1.0,
                        block_rows=None, block_hw=None, targets_are_binary=True):
    assert logits.shape == targets.shape and logits.ndim == 4
    N, C, H, W = logits.shape
    nc, hw = N * C, H * W
    n_elems = nc * hw

    # Flatten NCHW -> (N*C, H*W): spatial dims collapse onto the lane axis,
    # matching the dice reduction over dims (2, 3).
    x2 = logits.reshape(nc, hw)
    t2 = targets.reshape(nc, hw)
    if targets_are_binary and t2.dtype == jnp.float32:
        t2 = t2.astype(jnp.bfloat16)   # 0/1 masks are exact in bf16 -> half the DMA bytes

    # Tile selection: lanes in multiples of 128, rows in multiples of 8, sized so
    # double-buffered inputs + 3 f32 accumulators stay well under the scoped VMEM
    # limit on every generation (v7x has only 64 MiB physical VMEM).
    vmem_budget = 20 * 1024 * 1024

    def vmem_estimate(r, c):
        in_bytes = r * c * (x2.dtype.itemsize + t2.dtype.itemsize) * 2   # double-buffered
        scratch = r * c * 4 * 3                                          # 3 f32 accumulators
        return in_bytes + scratch + 4 * 1024

    if block_hw is None:
        block_hw = _tile_candidates(hw, 128, 2048)[0]
    if block_rows is None:
        row_cands = _tile_candidates(nc, 8, 128)
        block_rows = row_cands[-1]
        for r in row_cands:
            if vmem_estimate(r, block_hw) <= vmem_budget:
                block_rows = r
                break
    assert nc % block_rows == 0 and hw % block_hw == 0
    row_tiles, hw_tiles = nc // block_rows, hw // block_hw

    kernel = functools.partial(
        _loss_kernel,
        alpha=float(alpha), gamma=float(gamma),
        bce_weight=float(bce_weight), focal_weight=float(focal_weight))

    cost = pl.CostEstimate(
        flops=int(20 * n_elems),
        transcendentals=int(3 * n_elems),
        bytes_accessed=int(x2.size * x2.dtype.itemsize
                           + t2.size * t2.dtype.itemsize + row_tiles * 128 * 4))

    partials = pl.pallas_call(
        kernel,
        out_shape=jax.ShapeDtypeStruct((row_tiles, 128), jnp.float32),
        grid_spec=pltpu.PrefetchScalarGridSpec(
            num_scalar_prefetch=0,
            grid=(row_tiles, hw_tiles),
            in_specs=[
                # On v5e, pipeline_mode=pl.Buffered(3) can be swept here if DMA is exposed.
                pl.BlockSpec((block_rows, block_hw), lambda i, j: (i, j)),
                pl.BlockSpec((block_rows, block_hw), lambda i, j: (i, j)),
            ],
            out_specs=pl.BlockSpec((1, 128), lambda i, j: (i, 0)),
            scratch_shapes=[
                pltpu.VMEM((block_rows, block_hw), jnp.float32),   # weighted bce+focal acc
                pltpu.VMEM((block_rows, block_hw), jnp.float32),   # sum(p*t) acc
                pltpu.VMEM((block_rows, block_hw), jnp.float32),   # sum(p+t) acc
            ],
        ),
        compiler_params=pltpu.CompilerParams(
            dimension_semantics=("parallel", "arbitrary"),
            vmem_limit_bytes=32 * 1024 * 1024),
        cost_estimate=cost,
    )(x2, t2)

    # Tiny JAX epilogue combining the per-row-tile partials (megacore-safe).
    bf_sum = jnp.sum(partials[:, 0])
    dice_sum = jnp.sum(partials[:, 1])
    return (bf_sum / jnp.float32(n_elems)
            + jnp.float32(dice_weight) * dice_sum / jnp.float32(nc))


def _reference(logits, targets, *, alpha=0.8, gamma=2.0,
               bce_weight=1.0, dice_weight=1.0, focal_weight=1.0):
    x = logits.astype(jnp.float32)
    t = targets.astype(jnp.float32)
    bce = jnp.mean(jnp.maximum(x, 0.0) - x * t + jnp.log1p(jnp.exp(-jnp.abs(x))))
    p = jax.nn.sigmoid(x)
    focal = (-alpha * (1 - p) ** gamma * t * jnp.log(p + 1e-7)
             - (1 - alpha) * p ** gamma * (1 - t) * jnp.log(1 - p + 1e-7))
    focal = jnp.mean(focal)
    inter = jnp.sum(p * t, axis=(2, 3))
    union = jnp.sum(p, axis=(2, 3)) + jnp.sum(t, axis=(2, 3))
    dice = jnp.mean(1.0 - (2.0 * inter + 1e-7) / (union + 1e-7))
    return bce_weight * bce + focal_weight * focal + dice_weight * dice


if __name__ == "__main__":
    key = jax.random.PRNGKey(0)
    k1, k2, k3, k4 = jax.random.split(key, 4)

    # Primary small shape (single-tile path).
    N, C, H, W = 2, 4, 16, 16
    logits = jax.random.normal(k1, (N, C, H, W), dtype=jnp.float32) * 2.0
    targets = (jax.random.uniform(k2, (N, C, H, W)) > 0.5).astype(jnp.float32)
    loss = jax.block_until_ready(dice_focal_bce_loss(logits, targets))
    ref = jax.block_until_ready(_reference(logits, targets))
    assert jnp.allclose(loss, ref, rtol=1e-5, atol=1e-5), (loss, ref)

    # Second shape exercising the multi-tile path (row_tiles=2, hw_tiles=3).
    N2, C2, H2, W2 = 4, 4, 32, 48
    logits2 = jax.random.normal(k3, (N2, C2, H2, W2), dtype=jnp.float32) * 2.0
    targets2 = (jax.random.uniform(k4, (N2, C2, H2, W2)) > 0.5).astype(jnp.float32)
    loss2 = jax.block_until_ready(
        dice_focal_bce_loss(logits2, targets2, block_rows=8, block_hw=512))
    ref2 = jax.block_until_ready(_reference(logits2, targets2))
    assert jnp.allclose(loss2, ref2, rtol=1e-5, atol=1e-5), (loss2, ref2)

    print("KERNEL_OK")
</pallas_src>

<mosaic_0001>
module attributes {stable_mosaic.version = 11 : i64} {
  func.func @_loss_kernel(%arg0: i32, %arg1: i32, %arg2: memref<8x256xf32, #tpu.memory_space<vmem>>, %arg3: memref<8x256xbf16, #tpu.memory_space<vmem>>, %arg4: memref<1x128xf32, #tpu.memory_space<vmem>>, %arg5: memref<8x256xf32, #tpu.memory_space<vmem>>, %arg6: memref<8x256xf32, #tpu.memory_space<vmem>>, %arg7: memref<8x256xf32, #tpu.memory_space<vmem>>) attributes {dimension_semantics = [#tpu.dimension_semantics<parallel>, #tpu.dimension_semantics<arbitrary>], iteration_bounds = array<i64: 1, 1>, scalar_prefetch = 0 : i64, scratch_operands = 3 : i64, tpu.core_type = #tpu.core_type<tc>, window_params = [{transform_indices = @transform_0, window_bounds = array<i64: 8, 256>}, {transform_indices = @transform_1, window_bounds = array<i64: 8, 256>}, {transform_indices = @transform_2, window_bounds = array<i64: 1, 128>}]} {
    %c0_i32 = arith.constant 0 : i32
    %0 = arith.cmpi eq, %arg1, %c0_i32 : i32
    %1 = arith.extui %0 : i1 to i32
    %c0_i32_0 = arith.constant 0 : i32
    %2 = arith.cmpi ne, %1, %c0_i32_0 : i32
    scf.if %2 {
      %cst_32 = arith.constant 0.000000e+00 : f32
      %67 = vector.broadcast %cst_32 : f32 to vector<8x256xf32>
      %c0_33 = arith.constant 0 : index
      %c0_34 = arith.constant 0 : index
      %68 = vector.load %arg5[%c0_33, %c0_34] : memref<8x256xf32, #tpu.memory_space<vmem>>, vector<8x256xf32>
      tpu.vector_store %arg5[%c0_33, %c0_34], %67 {strides = array<i32>} : memref<8x256xf32, #tpu.memory_space<vmem>>, vector<8x256xf32>,
      %cst_35 = arith.constant 0.000000e+00 : f32
      %69 = vector.broadcast %cst_35 : f32 to vector<8x256xf32>
      %c0_36 = arith.constant 0 : index
      %c0_37 = arith.constant 0 : index
      %70 = vector.load %arg6[%c0_36, %c0_37] : memref<8x256xf32, #tpu.memory_space<vmem>>, vector<8x256xf32>
      tpu.vector_store %arg6[%c0_36, %c0_37], %69 {strides = array<i32>} : memref<8x256xf32, #tpu.memory_space<vmem>>, vector<8x256xf32>,
      %cst_38 = arith.constant 0.000000e+00 : f32
      %71 = vector.broadcast %cst_38 : f32 to vector<8x256xf32>
      %c0_39 = arith.constant 0 : index
      %c0_40 = arith.constant 0 : index
      %72 = vector.load %arg7[%c0_39, %c0_40] : memref<8x256xf32, #tpu.memory_space<vmem>>, vector<8x256xf32>
      tpu.vector_store %arg7[%c0_39, %c0_40], %71 {strides = array<i32>} : memref<8x256xf32, #tpu.memory_space<vmem>>, vector<8x256xf32>,
    } else {
    }
    %c0 = arith.constant 0 : index
    %c0_1 = arith.constant 0 : index
    %3 = vector.load %arg2[%c0, %c0_1] : memref<8x256xf32, #tpu.memory_space<vmem>>, vector<8x256xf32>
    %c0_2 = arith.constant 0 : index
    %c0_3 = arith.constant 0 : index
    %4 = vector.load %arg3[%c0_2, %c0_3] : memref<8x256xbf16, #tpu.memory_space<vmem>>, vector<8x256xbf16>
    %5 = arith.extf %4 : vector<8x256xbf16> to vector<8x256xf32>
    %6 = math.absf %3 : vector<8x256xf32>
    %cst = arith.constant 0.000000e+00 : f32
    %7 = vector.broadcast %cst : f32 to vector<8x256xf32>
    %8 = arith.subf %7, %6 : vector<8x256xf32>
    %9 = math.exp %8 : vector<8x256xf32>
    %10 = math.log1p %9 : vector<8x256xf32>
    %cst_4 = arith.constant 0.000000e+00 : f32
    %11 = vector.broadcast %cst_4 : f32 to vector<8x256xf32>
    %12 = arith.maximumf %3, %11 : vector<8x256xf32>
    %cst_5 = arith.constant 0.000000e+00 : f32
    %13 = vector.broadcast %cst_5 : f32 to vector<8x256xf32>
    %14 = arith.subf %13, %3 : vector<8x256xf32>
    %cst_6 = arith.constant 0.000000e+00 : f32
    %15 = vector.broadcast %cst_6 : f32 to vector<8x256xf32>
    %16 = arith.maximumf %14, %15 : vector<8x256xf32>
    %cst_7 = arith.constant 0.000000e+00 : f32
    %17 = vector.broadcast %cst_7 : f32 to vector<8x256xf32>
    %18 = arith.cmpf oge, %3, %17 : vector<8x256xf32>
    %cst_8 = arith.constant 1.000000e+00 : f32
    %19 = vector.broadcast %cst_8 : f32 to vector<8x256xf32>
    %20 = arith.select %18, %19, %9 : vector<8x256xi1>, vector<8x256xf32>
    %cst_9 = arith.constant 1.000000e+00 : f32
    %21 = vector.broadcast %cst_9 : f32 to vector<8x256xf32>
    %22 = arith.addf %21, %9 : vector<8x256xf32>
    %23 = arith.divf %20, %22 : vector<8x256xf32>
    %24 = arith.addf %16, %10 : vector<8x256xf32>
    %cst_10 = arith.constant 0.000000e+00 : f32
    %25 = vector.broadcast %cst_10 : f32 to vector<8x256xf32>
    %26 = arith.subf %25, %24 : vector<8x256xf32>
    %27 = arith.addf %12, %10 : vector<8x256xf32>
    %cst_11 = arith.constant 0.000000e+00 : f32
    %28 = vector.broadcast %cst_11 : f32 to vector<8x256xf32>
    %29 = arith.subf %28, %27 : vector<8x256xf32>
    %30 = arith.mulf %3, %5 : vector<8x256xf32>
    %31 = arith.subf %12, %30 : vector<8x256xf32>
    %32 = arith.addf %31, %10 : vector<8x256xf32>
    %cst_12 = arith.constant 1.000000e+00 : f32
    %33 = vector.broadcast %cst_12 : f32 to vector<8x256xf32>
    %34 = arith.subf %33, %23 : vector<8x256xf32>
    %35 = arith.mulf %34, %34 : vector<8x256xf32>
    %36 = arith.mulf %23, %23 : vector<8x256xf32>
    %cst_13 = arith.constant -8.000000e-01 : f32
    %37 = vector.broadcast %cst_13 : f32 to vector<8x256xf32>
    %38 = arith.mulf %37, %35 : vector<8x256xf32>
    %39 = arith.mulf %38, %5 : vector<8x256xf32>
    %40 = arith.mulf %39, %26 : vector<8x256xf32>
    %cst_14 = arith.constant 2.000000e-01 : f32
    %41 = vector.broadcast %cst_14 : f32 to vector<8x256xf32>
    %42 = arith.mulf %41, %36 : vector<8x256xf32>
    %cst_15 = arith.constant 1.000000e+00 : f32
    %43 = vector.broadcast %cst_15 : f32 to vector<8x256xf32>
    %44 = arith.subf %43, %5 : vector<8x256xf32>
    %45 = arith.mulf %42, %44 : vector<8x256xf32>
    %46 = arith.mulf %45, %29 : vector<8x256xf32>
    %47 = arith.subf %40, %46 : vector<8x256xf32>
    %c0_16 = arith.constant 0 : index
    %c0_17 = arith.constant 0 : index
    %48 = vector.load %arg5[%c0_16, %c0_17] : memref<8x256xf32, #tpu.memory_space<vmem>>, vector<8x256xf32>
    %cst_18 = arith.constant 1.000000e+00 : f32
    %49 = vector.broadcast %cst_18 : f32 to vector<8x256xf32>
    %50 = arith.mulf %49, %32 : vector<8x256xf32>
    %cst_19 = arith.constant 1.000000e+00 : f32
    %51 = vector.broadcast %cst_19 : f32 to vector<8x256xf32>
    %52 = arith.mulf %51, %47 : vector<8x256xf32>
    %53 = arith.addf %50, %52 : vector<8x256xf32>
    %54 = arith.addf %48, %53 : vector<8x256xf32>
    %c0_20 = arith.constant 0 : index
    %c0_21 = arith.constant 0 : index
    %55 = vector.load %arg5[%c0_20, %c0_21] : memref<8x256xf32, #tpu.memory_space<vmem>>, vector<8x256xf32>
    tpu.vector_store %arg5[%c0_20, %c0_21], %54 {strides = array<i32>} : memref<8x256xf32, #tpu.memory_space<vmem>>, vector<8x256xf32>,
    %c0_22 = arith.constant 0 : index
    %c0_23 = arith.constant 0 : index
    %56 = vector.load %arg6[%c0_22, %c0_23] : memref<8x256xf32, #tpu.memory_space<vmem>>, vector<8x256xf32>
    %57 = arith.mulf %23, %5 : vector<8x256xf32>
    %58 = arith.addf %56, %57 : vector<8x256xf32>
    %c0_24 = arith.constant 0 : index
    %c0_25 = arith.constant 0 : index
    %59 = vector.load %arg6[%c0_24, %c0_25] : memref<8x256xf32, #tpu.memory_space<vmem>>, vector<8x256xf32>
    tpu.vector_store %arg6[%c0_24, %c0_25], %58 {strides = array<i32>} : memref<8x256xf32, #tpu.memory_space<vmem>>, vector<8x256xf32>,
    %c0_26 = arith.constant 0 : index
    %c0_27 = arith.constant 0 : index
    %60 = vector.load %arg7[%c0_26, %c0_27] : memref<8x256xf32, #tpu.memory_space<vmem>>, vector<8x256xf32>
    %61 = arith.addf %23, %5 : vector<8x256xf32>
    %62 = arith.addf %60, %61 : vector<8x256xf32>
    %c0_28 = arith.constant 0 : index
    %c0_29 = arith.constant 0 : index
    %63 = vector.load %arg7[%c0_28, %c0_29] : memref<8x256xf32, #tpu.memory_space<vmem>>, vector<8x256xf32>
    tpu.vector_store %arg7[%c0_28, %c0_29], %62 {strides = array<i32>} : memref<8x256xf32, #tpu.memory_space<vmem>>, vector<8x256xf32>,
    %c0_i32_30 = arith.constant 0 : i32
    %64 = arith.cmpi eq, %arg1, %c0_i32_30 : i32
    %65 = arith.extui %64 : i1 to i32
    %c0_i32_31 = arith.constant 0 : i32
    %66 = arith.cmpi ne, %65, %c0_i32_31 : i32
    scf.if %66 {
      %c0_32 = arith.constant 0 : index
      %c0_33 = arith.constant 0 : index
      %67 = vector.load %arg6[%c0_32, %c0_33] : memref<8x256xf32, #tpu.memory_space<vmem>>, vector<8x256xf32>
      %cst_34 = arith.constant dense<0.000000e+00> : vector<8xf32>
      %68 = vector.multi_reduction <add>, %67, %cst_34 [1] : vector<8x256xf32> to vector<8xf32>
      %69 = vector.shape_cast %68 : vector<8xf32> to vector<8x1xf32>
      %c0_35 = arith.constant 0 : index
      %c0_36 = arith.constant 0 : index
      %70 = vector.load %arg7[%c0_35, %c0_36] : memref<8x256xf32, #tpu.memory_space<vmem>>, vector<8x256xf32>
      %cst_37 = arith.constant dense<0.000000e+00> : vector<8xf32>
      %71 = vector.multi_reduction <add>, %70, %cst_37 [1] : vector<8x256xf32> to vector<8xf32>
      %72 = vector.shape_cast %71 : vector<8xf32> to vector<8x1xf32>
      %cst_38 = arith.constant 2.000000e+00 : f32
      %73 = vector.broadcast %cst_38 : f32 to vector<8x1xf32>
      %74 = arith.mulf %73, %69 : vector<8x1xf32>
      %cst_39 = arith.constant 1.000000e-07 : f32
      %75 = vector.broadcast %cst_39 : f32 to vector<8x1xf32>
      %76 = arith.addf %74, %75 : vector<8x1xf32>
      %cst_40 = arith.constant 1.000000e-07 : f32
      %77 = vector.broadcast %cst_40 : f32 to vector<8x1xf32>
      %78 = arith.addf %72, %77 : vector<8x1xf32>
      %79 = arith.divf %76, %78 : vector<8x1xf32>
      %cst_41 = arith.constant 1.000000e+00 : f32
      %80 = vector.broadcast %cst_41 : f32 to vector<8x1xf32>
      %81 = arith.subf %80, %79 : vector<8x1xf32>
      %c0_42 = arith.constant 0 : index
      %c0_43 = arith.constant 0 : index
      %82 = vector.load %arg5[%c0_42, %c0_43] : memref<8x256xf32, #tpu.memory_space<vmem>>, vector<8x256xf32>
      %83 = vector.shape_cast %82 : vector<8x256xf32> to vector<1x8x256xf32>
      %cst_44 = arith.constant dense<0.000000e+00> : vector<1xf32>
      %84 = vector.multi_reduction <add>, %83, %cst_44 [1, 2] : vector<1x8x256xf32> to vector<1xf32>
      %85 = vector.shape_cast %84 : vector<1xf32> to vector<1x1x1xf32>
      %86 = vector.extract %85[0, 0, 0] : f32 from vector<1x1x1xf32>
      %87 = vector.broadcast %86 : f32 to vector<1x1xf32>
      %88 = vector.shape_cast %81 : vector<8x1xf32> to vector<1x8x1xf32>
      %cst_45 = arith.constant dense<0.000000e+00> : vector<1xf32>
      %89 = vector.multi_reduction <add>, %88, %cst_45 [1, 2] : vector<1x8x1xf32> to vector<1xf32>
      %90 = vector.shape_cast %89 : vector<1xf32> to vector<1x1x1xf32>
      %91 = vector.extract %90[0, 0, 0] : f32 from vector<1x1x1xf32>
      %92 = vector.broadcast %91 : f32 to vector<1x1xf32>
      %93 = tpu.iota {dimensions = array<i32: 1>} : vector<1x128xi32>
      %c0_i32_46 = arith.constant 0 : i32
      %94 = vector.broadcast %c0_i32_46 : i32 to vector<1x128xi32>
      %95 = arith.cmpi eq, %93, %94 : vector<1x128xi32>
      %c1_i32 = arith.constant 1 : i32
      %96 = vector.broadcast %c1_i32 : i32 to vector<1x128xi32>
      %97 = arith.cmpi eq, %93, %96 : vector<1x128xi32>
      %cst_47 = arith.constant 0.000000e+00 : f32
      %98 = vector.shape_cast %92 : vector<1x1xf32> to vector<1x1xf32>
      %99 = vector.broadcast %98 : vector<1x1xf32> to vector<1x128xf32>
      %100 = vector.broadcast %cst_47 : f32 to vector<1x128xf32>
      %101 = arith.select %97, %99, %100 : vector<1x128xi1>, vector<1x128xf32>
      %102 = vector.shape_cast %87 : vector<1x1xf32> to vector<1x1xf32>
      %103 = vector.broadcast %102 : vector<1x1xf32> to vector<1x128xf32>
      %104 = arith.select %95, %103, %101 : vector<1x128xi1>, vector<1x128xf32>
      %c0_48 = arith.constant 0 : index
      %c0_49 = arith.constant 0 : index
      %105 = vector.load %arg4[%c0_48, %c0_49] : memref<1x128xf32, #tpu.memory_space<vmem>>, vector<1x128xf32>
      tpu.vector_store %arg4[%c0_48, %c0_49], %104 {strides = array<i32>} : memref<1x128xf32, #tpu.memory_space<vmem>>, vector<1x128xf32>,
    } else {
    }
    return
  }
  func.func @transform_0(%arg0: i32, %arg1: i32) -> (i32, i32) {
    %c0_i32 = arith.constant 0 : i32
    return %arg0, %arg1 : i32, i32
  }
  func.func @transform_1(%arg0: i32, %arg1: i32) -> (i32, i32) {
    %c0_i32 = arith.constant 0 : i32
    return %arg0, %arg1 : i32, i32
  }
  func.func @transform_2(%arg0: i32, %arg1: i32) -> (i32, i32) {
    %c0_i32 = arith.constant 0 : i32
    %c0_i32_0 = arith.constant 0 : i32
    return %arg0, %c0_i32 : i32, i32
  }
}

</mosaic_0001>

<llo_original>
// kernel: tpu_custom_call.1
$region0: #{tpu_custom_call.1}
  #allocation0 [shape = 'u32[]', space=smem, size = 0x4, offset = 0x4, fixed_abs, tag = 'smem constant byte address 0x4 - core index']
  #allocation1 [shape = 'u32[72,128]{1,0:T(1,128)}', space=vmem, size = 0x9000, scoped, tag = 'internal scratch']
  #allocation2 [shape = 'f32[8,256]{1,0:T(8,128)}', space=vmem, size = 0x2000, scoped, tag = 'scratch operand']
  #allocation3 [shape = 'f32[8,256]{1,0:T(8,128)}', space=vmem, size = 0x2000, scoped, tag = 'scratch operand']
  #allocation4 [shape = 'f32[8,256]{1,0:T(8,128)}', space=vmem, size = 0x2000, scoped, tag = 'scratch operand']
  %s0 = inlined_call_operand.hbm [shape: f32[8,256], index: 0, kind: input, shape index: {}]
  %s1 = inlined_call_operand.hbm [shape: bf16[8,256], index: 1, kind: input, shape index: {}]
  %s2 = inlined_call_operand.hbm [shape: f32[1,128], index: 2, kind: output, shape index: {}]
  %s3 = sld [smem:[#allocation0]]
  $region34: #{tpu_custom_call.1} parent=0
    _
  %s5 = ssub.s32 1, %s3
  %s6 = scalar_select 0, %s5, %s3
  $region1: #{tpu_custom_call.1} parent=0
    #allocation5 [shape = 'u8[8192]{0}', space=vmem, size = 0x2000, scoped, tag = 'input window, operand 0, single buffered']
    #allocation6 [shape = 's32[1]{0}', space=sflag, size = 0x4, scoped, tag = 'scoped memory for tpu_custom_call.1']
    #allocation7 [shape = 's32[1]{0}', space=sflag, size = 0x4, scoped, tag = 'scoped memory for tpu_custom_call.1']
    #allocation8 [shape = 'u8[4096]{0}', space=vmem, size = 0x1000, scoped, tag = 'input window, operand 1, single buffered']
    #allocation9 [shape = 's32[1]{0}', space=sflag, size = 0x4, scoped, tag = 'scoped memory for tpu_custom_call.1']
    #allocation10 [shape = 'u8[512]{0}', space=vmem, size = 0x400, scoped, tag = 'output window, operand 0, single buffered']
    %7 = vsyncpa [#allocation6], 0
    %8 = vsyncpa [#allocation9], 0
    %9 = vsyncpa [#allocation7], 0
    // Predicated region
    $region2: #{tpu_custom_call.1} parent=1 // pred_check
      _
    $region3: #{tpu_custom_call.1} parent=1 // pred_check_branch
      %11 = sbr.rel (0) target = $region5
    $region4: #{tpu_custom_call.1} parent=1 // pred_region
      %13 = vsyncadd [#allocation6], 0
      %s15 = sshll.u32 %s0, 4
      %s16 = int_to_ptr.hbm [resolvable:$true] %s15
      %s17 = sshll.u32 [#allocation5], 4
      %s18 = int_to_ptr.vmem [resolvable:$true] %s17
      %20 = dma.hbm_to_vmem [thread:$0]  %s16, 256, %s18, [#allocation6]
    $region5: #{tpu_custom_call.1} parent=1 // pred_fallthru
      _
    // Predicated region
    $region6: #{tpu_custom_call.1} parent=1 // pred_check
      _
    $region7: #{tpu_custom_call.1} parent=1 // pred_check_branch
      %22 = sbr.rel (0) target = $region9
    $region8: #{tpu_custom_call.1} parent=1 // pred_region
      %24 = vsyncadd [#allocation9], 0
      %s26 = sshll.u32 %s1, 4
      %s27 = int_to_ptr.hbm [resolvable:$true] %s26
      %s28 = sshll.u32 [#allocation8], 4
      %s29 = int_to_ptr.vmem [resolvable:$true] %s28
      %31 = dma.hbm_to_vmem [thread:$0]  %s27, 128, %s29, [#allocation9]
    $region9: #{tpu_custom_call.1} parent=1 // pred_fallthru
      _
    // Predicated region
    $region10: #{tpu_custom_call.1} parent=1 // pred_check
      _
    $region11: #{tpu_custom_call.1} parent=1 // pred_check_branch
      %33 = sbr.rel (0) target = $region13
    $region12: #{tpu_custom_call.1} parent=1 // pred_region
      %35 = dma.done [#allocation6], 256
    $region13: #{tpu_custom_call.1} parent=1 // pred_fallthru
      _
    // Predicated region
    $region14: #{tpu_custom_call.1} parent=1 // pred_check
      _
    $region15: #{tpu_custom_call.1} parent=1 // pred_check_branch
      %37 = sbr.rel (0) target = $region17
    $region16: #{tpu_custom_call.1} parent=1 // pred_region
      %39 = dma.done [#allocation9], 128
    $region17: #{tpu_custom_call.1} parent=1 // pred_fallthru
      _
    %p40 = scmp.eq.s32.totalorder 0, 0
    // Predicated region
    $region18: #{tpu_custom_call.1} parent=1 // pred_check
      %p41 = pneg %p40
    $region19: #{tpu_custom_call.1} parent=1 // pred_check_branch
      %43 = sbr.rel (%p41) target = $region21
    $region20: #{tpu_custom_call.1} parent=1 // pred_region
      %44 = vst [vmem:[#allocation2] sm:$0xff] 0.0
      %45 = vst [vmem:[#allocation2 + $0x8] sm:$0xff] 0.0
      %46 = vst [vmem:[#allocation3] sm:$0xff] 0.0
      %47 = vst [vmem:[#allocation3 + $0x8] sm:$0xff] 0.0
      %48 = vst [vmem:[#allocation4] sm:$0xff] 0.0
      %49 = vst [vmem:[#allocation4 + $0x8] sm:$0xff] 0.0
    $region21: #{tpu_custom_call.1} parent=1 // pred_fallthru
      _
    %v50 = vld [vmem:[#allocation5] sm:$0xff]
    %v51 = vld [vmem:[#allocation5 + $0x8] sm:$0xff]
    %v52 = vld [vmem:[#allocation8] sm:$0xff]
    %v53 = vunpack.c.l.bf16 %v52
    %v54 = vunpack.c.h.bf16 %v52
    %v55 = vand.u32 2147483647, %v50
    %v56 = vand.u32 2147483647, %v51
    %v57 = vsub.f32 0.0, %v55
    %v58 = vsub.f32 0.0, %v56
    %v59 = vmul.f32 %v57, 1.442695
    %v60 = vpow.pop %v59
    %v61 = vmul.f32 %v58, 1.442695
    %v62 = vpow.pop %v61
    %v63 = vadd.f32 %v60, 1.0
    %v64 = vlog2.pop %v63
    %v65 = vmul.f32 %v64, 0.6931472
    %v66 = vmul.f32 -0.5, %v60
    %v67 = vadd.f32 %v66, 1.0
    %v68 = vmul.f32 %v67, %v60
    %v69 = vand.u32 2147483647, %v60
    %vm70 = vcmp.lt.f32.partialorder %v69, 0.0004427343
    %v71 = vsel %vm70, %v68, %v65
    %v72 = vadd.f32 %v62, 1.0
    %v73 = vlog2.pop %v72
    %v74 = vmul.f32 %v73, 0.6931472
    %v75 = vmul.f32 -0.5, %v62
    %v76 = vadd.f32 %v75, 1.0
    %v77 = vmul.f32 %v76, %v62
    %v78 = vand.u32 2147483647, %v62
    %vm79 = vcmp.lt.f32.partialorder %v78, 0.0004427343
    %v80 = vsel %vm79, %v77, %v74
    %v81 = vmax.f32 %v50, 0.0
    %v82 = vmax.f32 %v51, 0.0
    %v83 = vsub.f32 0.0, %v50
    %v84 = vsub.f32 0.0, %v51
    %v85 = vmax.f32 %v83, 0.0
    %v86 = vmax.f32 %v84, 0.0
    %vm87 = vcmp.ge.f32.partialorder %v50, 0.0
    %vm88 = vcmp.ge.f32.partialorder %v51, 0.0
    %v89 = vsel %vm87, 1.0, %v60
    %v90 = vsel %vm88, 1.0, %v62
    %v91 = vadd.f32 %v60, 1.0
    %v92 = vadd.f32 %v62, 1.0
    %v93 = vrcp.pop %v91
    %v94 = vmul.f32 %v91, %v93
    %v95 = vsub.f32 1.0, %v94
    %v96 = vmul.f32 %v93, %v95
    %v97 = vadd.f32 %v93, %v96
    %vm98 = vweird.f32 %v91
    %vm99 = vweird.f32 %v93
    %vm100 = vmor %vm98, %vm99
    %v101 = vsel %vm100, %v93, %v97
    %v102 = vand.u32 2147483647, %v91
    %vm103 = vcmp.eq.f32.partialorder %v102, 8.507059e+37
    %v104 = vand.u32 %v91, 2147483648
    %v105 = vor.u32 1.1754944e-38, %v104
    %v106 = vsel %vm103, %v105, %v101
    %v107 = vmul.f32 %v89, %v106
    %v108 = vrcp.pop %v92
    %v109 = vmul.f32 %v92, %v108
    %v110 = vsub.f32 1.0, %v109
    %v111 = vmul.f32 %v108, %v110
    %v112 = vadd.f32 %v108, %v111
    %vm113 = vweird.f32 %v92
    %vm114 = vweird.f32 %v108
    %vm115 = vmor %vm113, %vm114
    %v116 = vsel %vm115, %v108, %v112
    %v117 = vand.u32 2147483647, %v92
    %vm118 = vcmp.eq.f32.partialorder %v117, 8.507059e+37
    %v119 = vand.u32 %v92, 2147483648
    %v120 = vor.u32 1.1754944e-38, %v119
    %v121 = vsel %vm118, %v120, %v116
    %v122 = vmul.f32 %v90, %v121
    %v123 = vadd.f32 %v85, %v71
    %v124 = vadd.f32 %v86, %v80
    %v125 = vsub.f32 0.0, %v123
    %v126 = vsub.f32 0.0, %v124
    %v127 = vadd.f32 %v81, %v71
    %v128 = vadd.f32 %v82, %v80
    %v129 = vsub.f32 0.0, %v127
    %v130 = vsub.f32 0.0, %v128
    %v131 = vmul.f32 %v50, %v53
    %v132 = vmul.f32 %v51, %v54
    %v133 = vsub.f32 %v81, %v131
    %v134 = vsub.f32 %v82, %v132
    %v135 = vadd.f32 %v133, %v71
    %v136 = vadd.f32 %v134, %v80
    %v137 = vsub.f32 1.0, %v107
    %v138 = vsub.f32 1.0, %v122
    %v139 = vmul.f32 %v137, %v137
    %v140 = vmul.f32 %v138, %v138
    %v141 = vmul.f32 %v107, %v107
    %v142 = vmul.f32 %v122, %v122
    %v143 = vmul.f32 %v139, -0.8
    %v144 = vmul.f32 %v140, -0.8
    %v145 = vmul.f32 %v143, %v53
    %v146 = vmul.f32 %v144, %v54
    %v147 = vmul.f32 %v145, %v125
    %v148 = vmul.f32 %v146, %v126
    %v149 = vmul.f32 %v141, 0.2
    %v150 = vmul.f32 %v142, 0.2
    %v151 = vsub.f32 1.0, %v53
    %v152 = vsub.f32 1.0, %v54
    %v153 = vmul.f32 %v149, %v151
    %v154 = vmul.f32 %v150, %v152
    %v155 = vmul.f32 %v153, %v129
    %v156 = vmul.f32 %v154, %v130
    %v157 = vsub.f32 %v147, %v155
    %v158 = vsub.f32 %v148, %v156
    %v159 = vld [vmem:[#allocation2] sm:$0xff]
    %v160 = vld [vmem:[#allocation2 + $0x8] sm:$0xff]
    %v161 = vadd.f32 %v135, %v157
    %v162 = vadd.f32 %v136, %v158
    %v163 = vadd.f32 %v159, %v161
    %v164 = vadd.f32 %v160, %v162
    %165 = vst [vmem:[#allocation2] sm:$0xff] %v163
    %166 = vst [vmem:[#allocation2 + $0x8] sm:$0xff] %v164
    %v167 = vld [vmem:[#allocation3] sm:$0xff]
    %v168 = vld [vmem:[#allocation3 + $0x8] sm:$0xff]
    %v169 = vmul.f32 %v107, %v53
    %v170 = vmul.f32 %v122, %v54
    %v171 = vadd.f32 %v167, %v169
    %v172 = vadd.f32 %v168, %v170
    %173 = vst [vmem:[#allocation3] sm:$0xff] %v171
    %174 = vst [vmem:[#allocation3 + $0x8] sm:$0xff] %v172
    %v175 = vld [vmem:[#allocation4] sm:$0xff]
    %v176 = vld [vmem:[#allocation4 + $0x8] sm:$0xff]
    %v177 = vadd.f32 %v107, %v53
    %v178 = vadd.f32 %v122, %v54
    %v179 = vadd.f32 %v175, %v177
    %v180 = vadd.f32 %v176, %v178
    %181 = vst [vmem:[#allocation4] sm:$0xff] %v179
    %182 = vst [vmem:[#allocation4 + $0x8] sm:$0xff] %v180
    // Predicated region
    $region22: #{tpu_custom_call.1} parent=1 // pred_check
      %p183 = pneg %p40
    $region23: #{tpu_custom_call.1} parent=1 // pred_check_branch
      %185 = sbr.rel (%p183) target = $region25
    $region24: #{tpu_custom_call.1} parent=1 // pred_region
      %v186 = vld [vmem:[#allocation3] sm:$0xff]
      %v187 = vld [vmem:[#allocation3 + $0x8] sm:$0xff]
      %v188 = vadd.f32 %v186, %v187
      %189 = vadd.xlane.f32.xlu0 %v188
      %v190 = vpop.xlane.xlu0 %189
      %v191 = vld [vmem:[#allocation4] sm:$0xff]
      %v192 = vld [vmem:[#allocation4 + $0x8] sm:$0xff]
      %v193 = vadd.f32 %v191, %v192
      %194 = vadd.xlane.f32.xlu0 %v193
      %v195 = vpop.xlane.xlu0 %194
      %v196 = vmul.f32 %v190, 2.0
      %v197 = vadd.f32 %v196, 1e-07
      %v198 = vadd.f32 %v195, 1e-07
      %v199 = vrcp.pop %v198
      %v200 = vmul.f32 %v198, %v199
      %v201 = vsub.f32 1.0, %v200
      %v202 = vmul.f32 %v199, %v201
      %v203 = vadd.f32 %v199, %v202
      %vm204 = vweird.f32 %v198
      %vm205 = vweird.f32 %v199
      %vm206 = vmor %vm204, %vm205
      %v207 = vsel %vm206, %v199, %v203
      %v208 = vand.u32 2147483647, %v198
      %vm209 = vcmp.eq.f32.partialorder %v208, 8.507059e+37
      %v210 = vand.u32 %v198, 2147483648
      %v211 = vor.u32 1.1754944e-38, %v210
      %v212 = vsel %vm209, %v211, %v207
      %v213 = vmul.f32 %v197, %v212
      %v214 = vsub.f32 1.0, %v213
      %v215 = vld [vmem:[#allocation2] sm:$0xff]
      %v216 = vld [vmem:[#allocation2 + $0x8] sm:$0xff]
      %v217 = vadd.f32 %v215, %v216
      %218 = vadd.xlane.f32.xlu0 %v217
      %v219 = vpop.xlane.xlu0 %218
      %v220 = vrot.slane %v219, 4
      %v221 = vadd.f32 %v219, %v220
      %v222 = vrot.slane %v221, 2
      %v223 = vadd.f32 %v221, %v222
      %v224 = vrot.slane %v223, 1
      %v225 = vadd.f32 %v223, %v224
      %s226 = vtos %v225
      %vm227 = vcmask 7168
      %v228 = vsel %vm227, %v214, 0.0
      %229 = vadd.xlane.f32.xlu0 %v228
      %v230 = vpop.xlane.xlu0 %229
      %v231 = vrot.slane %v230, 4
      %v232 = vadd.f32 %v230, %v231
      %v233 = vrot.slane %v232, 2
      %v234 = vadd.f32 %v232, %v233
      %v235 = vrot.slane %v234, 1
      %v236 = vadd.f32 %v234, %v235
      %s237 = vtos %v236
      %v238 = vlaneseq
      %v239 = vand.u32 %v238, 127
      %vm240 = vcmp.eq.s32.totalorder %v239, 0
      %vm241 = vcmp.eq.s32.totalorder %v239, 1
      %v242 = vstv %s237
      %v243 = vsel %vm241, %v242, 0.0
      %v244 = vstv %s226
      %v245 = vsel %vm240, %v244, %v243
      %246 = vst [vmem:[#allocation10] sm:$0x1] %v245
    $region25: #{tpu_custom_call.1} parent=1 // pred_fallthru
      _
    // Predicated region
    $region26: #{tpu_custom_call.1} parent=1 // pred_check
      _
    $region27: #{tpu_custom_call.1} parent=1 // pred_check_branch
      %248 = sbr.rel (0) target = $region29
    $region28: #{tpu_custom_call.1} parent=1 // pred_region
      %250 = vsyncadd [#allocation7], 0
      %s252 = sshll.u32 [#allocation10], 4
      %s253 = int_to_ptr.vmem [resolvable:$true] %s252
      %s254 = sshll.u32 %s2, 4
      %s255 = int_to_ptr.hbm [resolvable:$true] %s254
      %257 = dma.vmem_to_hbm [thread:$0]  %s253, 16, %s255, [#allocation7]
    $region29: #{tpu_custom_call.1} parent=1 // pred_fallthru
      _
    // Predicated region
    $region30: #{tpu_custom_call.1} parent=1 // pred_check
      _
    $region31: #{tpu_custom_call.1} parent=1 // pred_check_branch
      %259 = sbr.rel (0) target = $region33
    $region32: #{tpu_custom_call.1} parent=1 // pred_region
      %261 = dma.done [#allocation7], 16
    $region33: #{tpu_custom_call.1} parent=1 // pred_fallthru
      _
    %262 = vsyncpa [#allocation6], 1
    %263 = vsyncpa [#allocation9], 1
    %264 = vsyncpa [#allocation7], 1

</llo_original>
